<compile_context>
chip_gen: v6e
topology: v6e:2x2x1
jax: 0.10.0
libtpu: 0.0.40
codegen_flags: <defaults>
</compile_context>

<pallas_src>
import math

import jax
import jax.numpy as jnp
from jax import lax
from jax.experimental import pallas as pl
from jax.experimental.pallas import tpu as pltpu

BATCH = 2
SEQ = 8
EMBED_DIM = 32   # module's `embed_dim` (forward's self.embed_dim)
LANE = 128       # lane-tile width; v/q/k each occupy one full lane tile
KPAD = 128       # projection contraction dim, zero-padded from 3*D = 96


def fused_self_attention_kernel(x_ref, w_ref, b_ref, mask_ref, o_ref):
    # x_ref:    (M, 128)   [query | key | value | 0-pad] features
    # w_ref:    (128, 384) block-diagonal fused weight (v | q | k lane tiles)
    # b_ref:    (1, 384)   fused bias
    # mask_ref: (M, M)     additive mask (cross-batch entries = -1e30)
    # o_ref:    (M, 128)   lane-dense output slab (real data in cols 0:D)

    # One fused MXU matmul produces all three projections.
    proj = jnp.dot(x_ref[...], w_ref[...],
                   preferred_element_type=jnp.float32) + b_ref[...]

    # Full 128-lane-tile slices: free vreg views, no masked lane extracts.
    v = proj[:, 0 * LANE:1 * LANE]   # v proj in cols 0:D, zeros after
    q = proj[:, 1 * LANE:2 * LANE]   # q proj in cols 0:D (of this tile)
    k = proj[:, 2 * LANE:3 * LANE]   # k proj in cols 0:D (of this tile)

    # scores = q @ k^T (contract last dims; zero-padded lanes contribute 0).
    # NOTE: any residual k relayout is a couple of XLU ops under MXU slack.
    scores = lax.dot_general(q, k, (((1,), (1,)), ((), ())),
                             preferred_element_type=jnp.float32)
    scores = scores * (1.0 / math.sqrt(EMBED_DIM)) + mask_ref[...]

    # Numerically stable softmax over the (batch-masked) key axis.
    m = jnp.max(scores, axis=-1, keepdims=True)
    e = jnp.exp(scores - m)
    denom = jnp.sum(e, axis=-1, keepdims=True)
    # EUP approx reciprocal + one Newton step: ~2^-24 rel err, EUP slot is free.
    r = pl.reciprocal(denom, approx=True)
    r = r * (2.0 - denom * r)
    attn = e * r

    # Weighted sum of values -> lane-dense (M, 128) slab, unmasked full store.
    out = jnp.dot(attn, v, preferred_element_type=jnp.float32)
    o_ref[...] = out.astype(o_ref.dtype)


def make_self_attention(wq, bq, wk, bk, wv, bv, attn_mask, *, batch=BATCH, seq=SEQ):
    """Build fused weight / bias / mask ONCE; return a jitted forward fn.

    wq/wk/wv: (D, D) PyTorch layout (out, in). bq/bk/bv: (D,).
    attn_mask: (S, S) additive, broadcast over batch.
    """
    D = wq.shape[0]
    M = batch * seq
    NW = 3 * LANE

    # Block-diagonal fused weight, contraction dim padded to KPAD=128.
    #   feature rows 2D:3D (value) -> lane tile 0 (cols 0:D)
    #   feature rows 0:D   (query) -> lane tile 1 (cols 128:128+D)
    #   feature rows D:2D  (key)   -> lane tile 2 (cols 256:256+D)
    w_fused = jnp.zeros((KPAD, NW), jnp.float32)
    w_fused = w_fused.at[2 * D:3 * D, 0 * LANE:0 * LANE + D].set(wv.T)
    w_fused = w_fused.at[0 * D:1 * D, 1 * LANE:1 * LANE + D].set(wq.T)
    w_fused = w_fused.at[1 * D:2 * D, 2 * LANE:2 * LANE + D].set(wk.T)

    b_fused = jnp.zeros((1, NW), jnp.float32)
    b_fused = b_fused.at[0, 0 * LANE:0 * LANE + D].set(bv)
    b_fused = b_fused.at[0, 1 * LANE:1 * LANE + D].set(bq)
    b_fused = b_fused.at[0, 2 * LANE:2 * LANE + D].set(bk)

    # Full (M, M) additive mask: per-batch attn_mask on diagonal blocks,
    # -1e30 for cross-batch pairs (exp underflows to exactly 0 in f32).
    # Hoisted here (constant); 1 KiB at M=16.
    bidx = jnp.arange(M) // seq
    same = bidx[:, None] == bidx[None, :]
    full_mask = jnp.where(same, jnp.tile(attn_mask, (batch, batch)),
                          jnp.float32(-1e30)).astype(jnp.float32)

    zero_pad = jnp.zeros((batch, seq, KPAD - 3 * D), jnp.float32)

    vmem = pl.BlockSpec(memory_space=pltpu.MemorySpace.VMEM)
    call = pl.pallas_call(
        fused_self_attention_kernel,
        out_shape=jax.ShapeDtypeStruct((M, LANE), jnp.float32),
        in_specs=[vmem, vmem, vmem, vmem],
        out_specs=vmem,
    )

    @jax.jit
    def forward(query, key, value):
        # Only per-call host work: concat activations (+K pad) and reshape.
        x_cat = jnp.concatenate([query, key, value, zero_pad], axis=-1)
        x_cat = x_cat.reshape(M, KPAD)
        out_full = call(x_cat, w_fused, b_fused, full_mask)
        # Drop lane padding and restore (B, S, D).
        return out_full[:, :D].reshape(batch, seq, D)

    return forward


def _reference(query, key, value, wq, bq, wk, bk, wv, bv, attn_mask):
    q = query @ wq.T + bq
    k = key @ wk.T + bk
    v = value @ wv.T + bv
    scores = jnp.einsum("bqd,bkd->bqk", q, k) / math.sqrt(EMBED_DIM)
    scores = scores + attn_mask
    attn = jax.nn.softmax(scores, axis=-1)
    return jnp.einsum("bqk,bkd->bqd", attn, v)


if __name__ == "__main__":
    key0 = jax.random.PRNGKey(0)
    ks = jax.random.split(key0, 10)

    query = jax.random.normal(ks[0], (BATCH, SEQ, EMBED_DIM), jnp.float32)
    key_in = jax.random.normal(ks[1], (BATCH, SEQ, EMBED_DIM), jnp.float32)
    value = jax.random.normal(ks[2], (BATCH, SEQ, EMBED_DIM), jnp.float32)

    # Deterministic "Linear" params, PyTorch layout W:(out,in), b:(out,)
    bound = 1.0 / math.sqrt(EMBED_DIM)
    wq = jax.random.uniform(ks[3], (EMBED_DIM, EMBED_DIM), jnp.float32, -bound, bound)
    wk = jax.random.uniform(ks[4], (EMBED_DIM, EMBED_DIM), jnp.float32, -bound, bound)
    wv = jax.random.uniform(ks[5], (EMBED_DIM, EMBED_DIM), jnp.float32, -bound, bound)
    bq = jax.random.uniform(ks[6], (EMBED_DIM,), jnp.float32, -bound, bound)
    bk = jax.random.uniform(ks[7], (EMBED_DIM,), jnp.float32, -bound, bound)
    bv = jax.random.uniform(ks[8], (EMBED_DIM,), jnp.float32, -bound, bound)

    # Additive attention mask (S, S).
    attn_mask = jnp.where(
        jax.random.uniform(ks[9], (SEQ, SEQ)) > 0.5, 0.0, -1e9
    ).astype(jnp.float32)

    # Build once (fused weight / bias / mask hoisted out of the per-call path).
    self_attention = make_self_attention(wq, bq, wk, bk, wv, bv, attn_mask)

    out = self_attention(query, key_in, value)
    out = jax.block_until_ready(out)

    ref = _reference(query, key_in, value, wq, bq, wk, bk, wv, bv, attn_mask)
    assert out.shape == (BATCH, SEQ, EMBED_DIM)
    assert jnp.allclose(out, ref, atol=1e-5, rtol=1e-5), "mismatch vs JAX reference"

    print("KERNEL_OK")
</pallas_src>

<mosaic_0001>
module attributes {stable_mosaic.version = 11 : i64} {
  func.func @fused_self_attention_kernel(%arg0: memref<16x128xf32, #tpu.memory_space<vmem>>, %arg1: memref<128x384xf32, #tpu.memory_space<vmem>>, %arg2: memref<1x384xf32, #tpu.memory_space<vmem>>, %arg3: memref<16x16xf32, #tpu.memory_space<vmem>>, %arg4: memref<16x128xf32, #tpu.memory_space<vmem>>) attributes {dimension_semantics = [], scalar_prefetch = 0 : i64, scratch_operands = 0 : i64, tpu.core_type = #tpu.core_type<tc>} {
    %c0 = arith.constant 0 : index
    %c0_0 = arith.constant 0 : index
    %0 = vector.load %arg0[%c0, %c0_0] : memref<16x128xf32, #tpu.memory_space<vmem>>, vector<16x128xf32>
    %c0_1 = arith.constant 0 : index
    %c0_2 = arith.constant 0 : index
    %1 = vector.load %arg1[%c0_1, %c0_2] : memref<128x384xf32, #tpu.memory_space<vmem>>, vector<128x384xf32>
    %cst = arith.constant dense<0.000000e+00> : vector<16x384xf32>
    %2 = tpu.matmul %0, %1, %cst {dimension_numbers = #tpu.dot_dimension_numbers<[1], [0], [0], [1], [0, 0, 1, 1], [], []>} : vector<16x128xf32>, vector<128x384xf32>, vector<16x384xf32> -> vector<16x384xf32>
    %c0_3 = arith.constant 0 : index
    %c0_4 = arith.constant 0 : index
    %3 = vector.load %arg2[%c0_3, %c0_4] : memref<1x384xf32, #tpu.memory_space<vmem>>, vector<1x384xf32>
    %4 = vector.broadcast %3 : vector<1x384xf32> to vector<16x384xf32>
    %5 = arith.addf %2, %4 : vector<16x384xf32>
    %6 = vector.extract_strided_slice %5 {offsets = [0, 0], sizes = [16, 128], strides = [1, 1]} : vector<16x384xf32> to vector<16x128xf32>
    %7 = vector.extract_strided_slice %5 {offsets = [0, 128], sizes = [16, 128], strides = [1, 1]} : vector<16x384xf32> to vector<16x128xf32>
    %8 = vector.extract_strided_slice %5 {offsets = [0, 256], sizes = [16, 128], strides = [1, 1]} : vector<16x384xf32> to vector<16x128xf32>
    %cst_5 = arith.constant dense<0.000000e+00> : vector<16x16xf32>
    %9 = tpu.matmul %7, %8, %cst_5 {dimension_numbers = #tpu.dot_dimension_numbers<[1], [1], [0], [0], [0, 0, 1, 0], [], []>} : vector<16x128xf32>, vector<16x128xf32>, vector<16x16xf32> -> vector<16x16xf32>
    %cst_6 = arith.constant 0.176776692 : f32
    %10 = vector.broadcast %cst_6 : f32 to vector<16x16xf32>
    %11 = arith.mulf %9, %10 : vector<16x16xf32>
    %c0_7 = arith.constant 0 : index
    %c0_8 = arith.constant 0 : index
    %12 = vector.load %arg3[%c0_7, %c0_8] : memref<16x16xf32, #tpu.memory_space<vmem>>, vector<16x16xf32>
    %13 = arith.addf %11, %12 : vector<16x16xf32>
    %cst_9 = arith.constant dense<0xFF800000> : vector<16xf32>
    %14 = vector.multi_reduction <maximumf>, %13, %cst_9 [1] : vector<16x16xf32> to vector<16xf32>
    %15 = vector.shape_cast %14 : vector<16xf32> to vector<16x1xf32>
    %16 = vector.broadcast %15 : vector<16x1xf32> to vector<16x16xf32>
    %17 = arith.subf %13, %16 : vector<16x16xf32>
    %18 = math.exp %17 : vector<16x16xf32>
    %cst_10 = arith.constant dense<0.000000e+00> : vector<16xf32>
    %19 = vector.multi_reduction <add>, %18, %cst_10 [1] : vector<16x16xf32> to vector<16xf32>
    %20 = vector.shape_cast %19 : vector<16xf32> to vector<16x1xf32>
    %21 = tpu.reciprocal %20 {approx = true} : vector<16x1xf32> -> vector<16x1xf32>
    %22 = arith.mulf %20, %21 : vector<16x1xf32>
    %cst_11 = arith.constant 2.000000e+00 : f32
    %23 = vector.broadcast %cst_11 : f32 to vector<16x1xf32>
    %24 = arith.subf %23, %22 : vector<16x1xf32>
    %25 = arith.mulf %21, %24 : vector<16x1xf32>
    %26 = vector.broadcast %25 : vector<16x1xf32> to vector<16x16xf32>
    %27 = arith.mulf %18, %26 : vector<16x16xf32>
    %cst_12 = arith.constant dense<0.000000e+00> : vector<16x128xf32>
    %28 = tpu.matmul %27, %6, %cst_12 {dimension_numbers = #tpu.dot_dimension_numbers<[1], [0], [0], [1], [0, 0, 1, 1], [], []>} : vector<16x16xf32>, vector<16x128xf32>, vector<16x128xf32> -> vector<16x128xf32>
    %c0_13 = arith.constant 0 : index
    %c0_14 = arith.constant 0 : index
    %29 = vector.load %arg4[%c0_13, %c0_14] : memref<16x128xf32, #tpu.memory_space<vmem>>, vector<16x128xf32>
    tpu.vector_store %arg4[%c0_13, %c0_14], %28 {strides = array<i32>} : memref<16x128xf32, #tpu.memory_space<vmem>>, vector<16x128xf32>,
    return
  }
}

</mosaic_0001>

<llo_original>
// kernel: forward.1
$region0: #{forward.1}
  #allocation0 [shape = 'u32[]', space=smem, size = 0x4, offset = 0x4, fixed_abs, tag = 'smem constant byte address 0x4 - core index']
  #allocation1 [shape = 'u32[144,128]{1,0:T(1,128)}', space=vmem, size = 0x12000, scoped, tag = 'internal scratch']
  %s0 = inlined_call_operand.vmem [shape: f32[16,128], index: 0, kind: input, shape index: {}]
  %s1 = inlined_call_operand.hbm [shape: f32[128,384], index: 1, kind: input, shape index: {}]
  %s2 = inlined_call_operand.vmem [shape: f32[1,384], index: 2, kind: input, shape index: {}]
  %s3 = inlined_call_operand.vmem [shape: f32[16,16], index: 3, kind: input, shape index: {}]
  %s4 = inlined_call_operand.vmem [shape: f32[16,128], index: 4, kind: output, shape index: {}]
  %s5 = sld [smem:[#allocation0]]
  $region30: #{forward.1} parent=0
    _
  %s7 = ssub.s32 1, %s5
  %s8 = scalar_select 0, %s7, %s5
  $region1: #{forward.1} parent=0
    #allocation2 [shape = 'u8[196608]{0}', space=vmem, size = 0x30000, scoped, tag = 'input window, operand 1, single buffered']
    #allocation3 [shape = 's32[1]{0}', space=sflag, size = 0x4, scoped, tag = 'scoped memory for forward.1']
    %9 = vsyncpa [#allocation3], 0
    // Predicated region
    $region2: #{forward.1} parent=1 // pred_check
      _
    $region3: #{forward.1} parent=1 // pred_check_branch
      %11 = sbr.rel (0) target = $region5
    $region4: #{forward.1} parent=1 // pred_region
      _
    $region5: #{forward.1} parent=1 // pred_fallthru
      _
    // Predicated region
    $region6: #{forward.1} parent=1 // pred_check
      _
    $region7: #{forward.1} parent=1 // pred_check_branch
      %13 = sbr.rel (0) target = $region9
    $region8: #{forward.1} parent=1 // pred_region
      %s15 = ssub.s32 6144, 6144
      %16 = vsyncadd [#allocation3], %s15
      %s17 = sshll.u32 [#allocation2], 4
      %s18 = int_to_ptr.vmem [resolvable:$true] %s17
      %23 = dma.hbm_to_vmem [thread:$0]  %s1, 6144, %s18, [#allocation3], 384, 384, 24
    $region9: #{forward.1} parent=1 // pred_fallthru
      _
    // Predicated region
    $region10: #{forward.1} parent=1 // pred_check
      _
    $region11: #{forward.1} parent=1 // pred_check_branch
      %25 = sbr.rel (0) target = $region13
    $region12: #{forward.1} parent=1 // pred_region
      _
    $region13: #{forward.1} parent=1 // pred_fallthru
      _
    // Predicated region
    $region14: #{forward.1} parent=1 // pred_check
      _
    $region15: #{forward.1} parent=1 // pred_check_branch
      %27 = sbr.rel (0) target = $region17
    $region16: #{forward.1} parent=1 // pred_region
      _
    $region17: #{forward.1} parent=1 // pred_fallthru
      _
    // Predicated region
    $region18: #{forward.1} parent=1 // pred_check
      _
    $region19: #{forward.1} parent=1 // pred_check_branch
      %29 = sbr.rel (0) target = $region21
    $region20: #{forward.1} parent=1 // pred_region
      %30 = dma.done [#allocation3], 6144
    $region21: #{forward.1} parent=1 // pred_fallthru
      _
    %v31 = vld [vmem:[%s0] sm:$0xff]
    %v32 = vld [vmem:[%s0 + $0x8] sm:$0xff]
    %v33 = vld [vmem:[#allocation2] sm:$0xff]
    %v34 = vld [vmem:[#allocation2 + $0x8] sm:$0xff]
    %v35 = vld [vmem:[#allocation2 + $0x10] sm:$0xff]
    %v36 = vld [vmem:[#allocation2 + $0x18] sm:$0xff]
    %v37 = vld [vmem:[#allocation2 + $0x20] sm:$0xff]
    %v38 = vld [vmem:[#allocation2 + $0x28] sm:$0xff]
    %v39 = vld [vmem:[#allocation2 + $0x30] sm:$0xff]
    %v40 = vld [vmem:[#allocation2 + $0x38] sm:$0xff]
    %v41 = vld [vmem:[#allocation2 + $0x40] sm:$0xff]
    %v42 = vld [vmem:[#allocation2 + $0x48] sm:$0xff]
    %v43 = vld [vmem:[#allocation2 + $0x50] sm:$0xff]
    %v44 = vld [vmem:[#allocation2 + $0x58] sm:$0xff]
    %v45 = vld [vmem:[#allocation2 + $0x60] sm:$0xff]
    %v46 = vld [vmem:[#allocation2 + $0x68] sm:$0xff]
    %v47 = vld [vmem:[#allocation2 + $0x70] sm:$0xff]
    %v48 = vld [vmem:[#allocation2 + $0x78] sm:$0xff]
    %v49 = vld [vmem:[#allocation2 + $0x80] sm:$0xff]
    %v50 = vld [vmem:[#allocation2 + $0x88] sm:$0xff]
    %v51 = vld [vmem:[#allocation2 + $0x90] sm:$0xff]
    %v52 = vld [vmem:[#allocation2 + $0x98] sm:$0xff]
    %v53 = vld [vmem:[#allocation2 + $0xa0] sm:$0xff]
    %v54 = vld [vmem:[#allocation2 + $0xa8] sm:$0xff]
    %v55 = vld [vmem:[#allocation2 + $0xb0] sm:$0xff]
    %v56 = vld [vmem:[#allocation2 + $0xb8] sm:$0xff]
    %v57 = vld [vmem:[#allocation2 + $0xc0] sm:$0xff]
    %v58 = vld [vmem:[#allocation2 + $0xc8] sm:$0xff]
    %v59 = vld [vmem:[#allocation2 + $0xd0] sm:$0xff]
    %v60 = vld [vmem:[#allocation2 + $0xd8] sm:$0xff]
    %v61 = vld [vmem:[#allocation2 + $0xe0] sm:$0xff]
    %v62 = vld [vmem:[#allocation2 + $0xe8] sm:$0xff]
    %v63 = vld [vmem:[#allocation2 + $0xf0] sm:$0xff]
    %v64 = vld [vmem:[#allocation2 + $0xf8] sm:$0xff]
    %v65 = vld [vmem:[#allocation2 + $0x100] sm:$0xff]
    %v66 = vld [vmem:[#allocation2 + $0x108] sm:$0xff]
    %v67 = vld [vmem:[#allocation2 + $0x110] sm:$0xff]
    %v68 = vld [vmem:[#allocation2 + $0x118] sm:$0xff]
    %v69 = vld [vmem:[#allocation2 + $0x120] sm:$0xff]
    %v70 = vld [vmem:[#allocation2 + $0x128] sm:$0xff]
    %v71 = vld [vmem:[#allocation2 + $0x130] sm:$0xff]
    %v72 = vld [vmem:[#allocation2 + $0x138] sm:$0xff]
    %v73 = vld [vmem:[#allocation2 + $0x140] sm:$0xff]
    %v74 = vld [vmem:[#allocation2 + $0x148] sm:$0xff]
    %v75 = vld [vmem:[#allocation2 + $0x150] sm:$0xff]
    %v76 = vld [vmem:[#allocation2 + $0x158] sm:$0xff]
    %v77 = vld [vmem:[#allocation2 + $0x160] sm:$0xff]
    %v78 = vld [vmem:[#allocation2 + $0x168] sm:$0xff]
    %v79 = vld [vmem:[#allocation2 + $0x170] sm:$0xff]
    %v80 = vld [vmem:[#allocation2 + $0x178] sm:$0xff]
    %v81 = vld [vmem:[%s2] sm:$0x7]
    %v83 = vlaneseq
    %v84 = vshrl.u32 %v83, 7
    %v85 = vsub.s32 0, %v84
    %v86 = vrot.slane %v81, %v85
    %v87 = vlaneseq
    %v88 = vshrl.u32 %v87, 7
    %v89 = vsub.s32 1, %v88
    %v90 = vrot.slane %v81, %v89
    %v91 = vlaneseq
    %v92 = vshrl.u32 %v91, 7
    %v93 = vsub.s32 2, %v92
    %v94 = vrot.slane %v81, %v93
    %98 = vmatprep.subr.mxu0 %v79
    %99 = vmatpush1.msra.mxu0 %v78
    %100 = vmatprep.subr.mxu0 %v76
    %101 = vmatpush1.msra.mxu0 %v75
    %102 = vmatprep.subr.mxu0 %v73
    %103 = vmatpush1.msra.mxu0 %v72
    %104 = vmatprep.subr.mxu0 %v70
    %105 = vmatpush1.msra.mxu0 %v69
    %106 = vmatprep.subr.mxu0 %v67
    %107 = vmatpush1.msra.mxu0 %v66
    %108 = vmatprep.subr.mxu0 %v64
    %109 = vmatpush1.msra.mxu0 %v63
    %110 = vmatprep.subr.mxu0 %v61
    %111 = vmatpush1.msra.mxu0 %v60
    %112 = vmatprep.subr.mxu0 %v58
    %113 = vmatpush1.msra.mxu0 %v57
    %114 = vmatprep.subr.mxu0 %v55
    %115 = vmatpush1.msra.mxu0 %v54
    %116 = vmatprep.subr.mxu0 %v52
    %117 = vmatpush1.msra.mxu0 %v51
    %118 = vmatprep.subr.mxu0 %v49
    %119 = vmatpush1.msra.mxu0 %v48
    %120 = vmatprep.subr.mxu0 %v46
    %121 = vmatpush1.msra.mxu0 %v45
    %122 = vmatprep.subr.mxu0 %v43
    %123 = vmatpush1.msra.mxu0 %v42
    %124 = vmatprep.subr.mxu0 %v40
    %125 = vmatpush1.msra.mxu0 %v39
    %126 = vmatprep.subr.mxu0 %v37
    %127 = vmatpush1.msra.mxu0 %v36
    %128 = vmatprep.subr.mxu0 %v34
    %129 = vmatpush1.msra.mxu0 %v33
    %130 = vmatprep.subr.mxu0 0.0
    %131 = vmatpush2.msra.mxu0 0.0
    %132 = vmatprep.subr.mxu0 0.0
    %133 = vmatpush2.msra.mxu0 0.0
    %134 = vmatprep.subr.mxu0 0.0
    %135 = vmatpush2.msra.mxu0 0.0
    %136 = vmatprep.subr.mxu0 0.0
    %137 = vmatpush2.msra.mxu0 0.0
    %138 = vmatprep.subr.mxu0 0.0
    %139 = vmatpush2.msra.mxu0 0.0
    %140 = vmatprep.subr.mxu0 0.0
    %141 = vmatpush2.msra.mxu0 0.0
    %142 = vmatprep.subr.mxu0 0.0
    %143 = vmatpush2.msra.mxu0 0.0
    %144 = vmatprep.subr.mxu0 0.0
    %145 = vmatpush2.msra.mxu0 0.0
    %146 = vmatprep.subr.mxu0 0.0
    %147 = vmatpush2.msra.mxu0 0.0
    %148 = vmatprep.subr.mxu0 0.0
    %149 = vmatpush2.msra.mxu0 0.0
    %150 = vmatprep.subr.mxu0 0.0
    %151 = vmatpush2.msra.mxu0 0.0
    %152 = vmatprep.subr.mxu0 0.0
    %153 = vmatpush2.msra.mxu0 0.0
    %154 = vmatprep.subr.mxu0 0.0
    %155 = vmatpush2.msra.mxu0 0.0
    %156 = vmatprep.subr.mxu0 0.0
    %157 = vmatpush2.msra.mxu0 0.0
    %158 = vmatprep.subr.mxu0 0.0
    %159 = vmatpush2.msra.mxu0 0.0
    %160 = vmatprep.subr.mxu0 0.0
    %161 = vmatpush2.msra.mxu0 0.0
    %162 = vmatprep.mubr.f32.mxu0 0.0
    %163 = vmatmul.mubr.f32.gmra.mxu0 %v31
    %v164 = vpop.f32.mrf.mxu0
    %v165 = vadd.f32 %v86, %v164
    %v166 = vpop.f32.mrf.mxu0
    %v167 = vadd.f32 %v90, %v166
    %168 = vmatprep.mubr.f32.mxu0 0.0
    %169 = vmatmul.mubr.f32.gmra.mxu0 %v32
    %v170 = vpop.f32.mrf.mxu0
    %v171 = vadd.f32 %v86, %v170
    %v172 = vpop.f32.mrf.mxu0
    %v173 = vadd.f32 %v90, %v172
    %174 = vdwg.mxu0
    %175 = vmatprep.subr.mxu0 0.0
    %176 = vmatpush1.msra.mxu0 %v80
    %177 = vmatprep.subr.mxu0 0.0
    %178 = vmatpush1.msra.mxu0 %v77
    %179 = vmatprep.subr.mxu0 0.0
    %180 = vmatpush1.msra.mxu0 %v74
    %181 = vmatprep.subr.mxu0 0.0
    %182 = vmatpush1.msra.mxu0 %v71
    %183 = vmatprep.subr.mxu0 0.0
    %184 = vmatpush1.msra.mxu0 %v68
    %185 = vmatprep.subr.mxu0 0.0
    %186 = vmatpush1.msra.mxu0 %v65
    %187 = vmatprep.subr.mxu0 0.0
    %188 = vmatpush1.msra.mxu0 %v62
    %189 = vmatprep.subr.mxu0 0.0
    %190 = vmatpush1.msra.mxu0 %v59
    %191 = vmatprep.subr.mxu0 0.0
    %192 = vmatpush1.msra.mxu0 %v56
    %193 = vmatprep.subr.mxu0 0.0
    %194 = vmatpush1.msra.mxu0 %v53
    %195 = vmatprep.subr.mxu0 0.0
    %196 = vmatpush1.msra.mxu0 %v50
    %197 = vmatprep.subr.mxu0 0.0
    %198 = vmatpush1.msra.mxu0 %v47
    %199 = vmatprep.subr.mxu0 0.0
    %200 = vmatpush1.msra.mxu0 %v44
    %201 = vmatprep.subr.mxu0 0.0
    %202 = vmatpush1.msra.mxu0 %v41
    %203 = vmatprep.subr.mxu0 0.0
    %204 = vmatpush1.msra.mxu0 %v38
    %205 = vmatprep.subr.mxu0 0.0
    %206 = vmatpush1.msra.mxu0 %v35
    %207 = vmatprep.subr.mxu0 0.0
    %208 = vmatpush2.msra.mxu0 0.0
    %209 = vmatprep.subr.mxu0 0.0
    %210 = vmatpush2.msra.mxu0 0.0
    %211 = vmatprep.subr.mxu0 0.0
    %212 = vmatpush2.msra.mxu0 0.0
    %213 = vmatprep.subr.mxu0 0.0
    %214 = vmatpush2.msra.mxu0 0.0
    %215 = vmatprep.subr.mxu0 0.0
    %216 = vmatpush2.msra.mxu0 0.0
    %217 = vmatprep.subr.mxu0 0.0
    %218 = vmatpush2.msra.mxu0 0.0
    %219 = vmatprep.subr.mxu0 0.0
    %220 = vmatpush2.msra.mxu0 0.0
    %221 = vmatprep.subr.mxu0 0.0
    %222 = vmatpush2.msra.mxu0 0.0
    %223 = vmatprep.subr.mxu0 0.0
    %224 = vmatpush2.msra.mxu0 0.0
    %225 = vmatprep.subr.mxu0 0.0
    %226 = vmatpush2.msra.mxu0 0.0
    %227 = vmatprep.subr.mxu0 0.0
    %228 = vmatpush2.msra.mxu0 0.0
    %229 = vmatprep.subr.mxu0 0.0
    %230 = vmatpush2.msra.mxu0 0.0
    %231 = vmatprep.subr.mxu0 0.0
    %232 = vmatpush2.msra.mxu0 0.0
    %233 = vmatprep.subr.mxu0 0.0
    %234 = vmatpush2.msra.mxu0 0.0
    %235 = vmatprep.subr.mxu0 0.0
    %236 = vmatpush2.msra.mxu0 0.0
    %237 = vmatprep.subr.mxu0 0.0
    %238 = vmatpush2.msra.mxu0 0.0
    %239 = vmatprep.mubr.f32.mxu0 0.0
    %240 = vmatmul.mubr.f32.gmra.mxu0 %v31
    %v241 = vpop.f32.mrf.mxu0
    %v242 = vadd.f32 %v94, %v241
    %v243 = vpop.f32.mrf.mxu0
    %244 = vmatprep.mubr.f32.mxu0 0.0
    %245 = vmatmul.mubr.f32.gmra.mxu0 %v32
    %v246 = vpop.f32.mrf.mxu0
    %v247 = vadd.f32 %v94, %v246
    %v248 = vpop.f32.mrf.mxu0
    %249 = vdwg.mxu0
    %250 = vmatprep.subr.mxu0 0.0
    %251 = vmatpush1.xpose.msra.mxu0 0.0
    %252 = vmatprep.subr.mxu0 0.0
    %253 = vmatpush1.xpose.msra.mxu0 0.0
    %254 = vmatprep.subr.mxu0 0.0
    %255 = vmatpush1.xpose.msra.mxu0 0.0
    %256 = vmatprep.subr.mxu0 0.0
    %257 = vmatpush1.xpose.msra.mxu0 0.0
    %258 = vmatprep.subr.mxu0 0.0
    %259 = vmatpush1.xpose.msra.mxu0 0.0
    %260 = vmatprep.subr.mxu0 0.0
    %261 = vmatpush1.xpose.msra.mxu0 0.0
    %262 = vmatprep.subr.mxu0 0.0
    %263 = vmatpush1.xpose.msra.mxu0 0.0
    %264 = vmatprep.subr.mxu0 0.0
    %265 = vmatpush1.xpose.msra.mxu0 0.0
    %266 = vmatprep.subr.mxu0 0.0
    %267 = vmatpush1.xpose.msra.mxu0 0.0
    %268 = vmatprep.subr.mxu0 0.0
    %269 = vmatpush1.xpose.msra.mxu0 0.0
    %270 = vmatprep.subr.mxu0 0.0
    %271 = vmatpush1.xpose.msra.mxu0 0.0
    %272 = vmatprep.subr.mxu0 0.0
    %273 = vmatpush1.xpose.msra.mxu0 0.0
    %274 = vmatprep.subr.mxu0 0.0
    %275 = vmatpush1.xpose.msra.mxu0 0.0
    %276 = vmatprep.subr.mxu0 0.0
    %277 = vmatpush1.xpose.msra.mxu0 0.0
    %278 = vmatprep.subr.mxu0 0.0
    %279 = vmatpush1.xpose.msra.mxu0 %v247
    %280 = vmatprep.subr.mxu0 0.0
    %281 = vmatpush1.xpose.msra.mxu0 %v242
    %282 = vmatprep.subr.mxu0 0.0
    %283 = vmatpush2.xpose.msra.mxu0 0.0
    %284 = vmatprep.subr.mxu0 0.0
    %285 = vmatpush2.xpose.msra.mxu0 0.0
    %286 = vmatprep.subr.mxu0 0.0
    %287 = vmatpush2.xpose.msra.mxu0 0.0
    %288 = vmatprep.subr.mxu0 0.0
    %289 = vmatpush2.xpose.msra.mxu0 0.0
    %290 = vmatprep.subr.mxu0 0.0
    %291 = vmatpush2.xpose.msra.mxu0 0.0
    %292 = vmatprep.subr.mxu0 0.0
    %293 = vmatpush2.xpose.msra.mxu0 0.0
    %294 = vmatprep.subr.mxu0 0.0
    %295 = vmatpush2.xpose.msra.mxu0 0.0
    %296 = vmatprep.subr.mxu0 0.0
    %297 = vmatpush2.xpose.msra.mxu0 0.0
    %298 = vmatprep.subr.mxu0 0.0
    %299 = vmatpush2.xpose.msra.mxu0 0.0
    %300 = vmatprep.subr.mxu0 0.0
    %301 = vmatpush2.xpose.msra.mxu0 0.0
    %302 = vmatprep.subr.mxu0 0.0
    %303 = vmatpush2.xpose.msra.mxu0 0.0
    %304 = vmatprep.subr.mxu0 0.0
    %305 = vmatpush2.xpose.msra.mxu0 0.0
    %306 = vmatprep.subr.mxu0 0.0
    %307 = vmatpush2.xpose.msra.mxu0 0.0
    %308 = vmatprep.subr.mxu0 0.0
    %309 = vmatpush2.xpose.msra.mxu0 0.0
    %310 = vmatprep.subr.mxu0 0.0
    %311 = vmatpush2.xpose.msra.mxu0 0.0
    %312 = vmatprep.subr.mxu0 0.0
    %313 = vmatpush2.xpose.msra.mxu0 0.0
    %314 = vmatprep.mubr.f32.mxu0 0.0
    %315 = vmatmul.mubr.f32.gmra.mxu0 %v167
    %v316 = vpop.f32.mrf.mxu0
    %v317 = vadd.f32 0.0, %v316
    %v318 = vpop.f32.mrf.mxu0
    %319 = vmatprep.mubr.f32.mxu0 0.0
    %320 = vmatmul.mubr.f32.gmra.mxu0 %v173
    %v321 = vpop.f32.mrf.mxu0
    %v322 = vadd.f32 0.0, %v321
    %v323 = vpop.f32.mrf.mxu0
    %324 = vdwg.mxu0
    %v325 = vmul.f32 %v317, 0.17677669
    %v326 = vmul.f32 %v322, 0.17677669
    %v327 = vld [vmem:[%s3] sm:$0xff]
    %v328 = vld [vmem:[%s3 + $0x8] sm:$0xff]
    %v329 = vadd.f32 %v325, %v327
    %v330 = vadd.f32 %v326, %v328
    %vm331 = vcmask 130048
    %v332 = vsel %vm331, %v329, -inf
    %333 = vmax.xlane.f32.xlu0 %v332
    %v334 = vpop.xlane.xlu0 %333
    %v335 = vsel %vm331, %v330, -inf
    %336 = vmax.xlane.f32.xlu0 %v335
    %v337 = vpop.xlane.xlu0 %336
    %v338 = vsub.f32 %v329, %v334
    %v339 = vsub.f32 %v330, %v337
    %v340 = vmul.f32 %v338, 1.442695
    %v341 = vpow.pop %v340
    %v342 = vmul.f32 %v339, 1.442695
    %v343 = vpow.pop %v342
    %v344 = vsel %vm331, %v341, 0.0
    %345 = vadd.xlane.f32.xlu0 %v344
    %v346 = vpop.xlane.xlu0 %345
    %v347 = vsel %vm331, %v343, 0.0
    %348 = vadd.xlane.f32.xlu0 %v347
    %v349 = vpop.xlane.xlu0 %348
    %v350 = vrcp.pop %v346
    %v351 = vrcp.pop %v349
    %v352 = vmul.f32 %v346, %v350
    %v353 = vmul.f32 %v349, %v351
    %v354 = vsub.f32 2.0, %v352
    %v355 = vsub.f32 2.0, %v353
    %v356 = vmul.f32 %v350, %v354
    %v357 = vmul.f32 %v351, %v355
    %v358 = vmul.f32 %v341, %v356
    %v359 = vmul.f32 %v343, %v357
    %v361 = vsel %vm331, %v358, 0
    %v364 = vsel %vm331, %v359, 0
    %366 = vmatprep.subr.mxu0 0.0
    %367 = vmatpush1.msra.mxu0 0.0
    %368 = vmatprep.subr.mxu0 0.0
    %369 = vmatpush1.msra.mxu0 0.0
    %370 = vmatprep.subr.mxu0 0.0
    %371 = vmatpush1.msra.mxu0 0.0
    %372 = vmatprep.subr.mxu0 0.0
    %373 = vmatpush1.msra.mxu0 0.0
    %374 = vmatprep.subr.mxu0 0.0
    %375 = vmatpush1.msra.mxu0 0.0
    %376 = vmatprep.subr.mxu0 0.0
    %377 = vmatpush1.msra.mxu0 0.0
    %378 = vmatprep.subr.mxu0 0.0
    %379 = vmatpush1.msra.mxu0 0.0
    %380 = vmatprep.subr.mxu0 0.0
    %381 = vmatpush1.msra.mxu0 0.0
    %382 = vmatprep.subr.mxu0 0.0
    %383 = vmatpush1.msra.mxu0 0.0
    %384 = vmatprep.subr.mxu0 0.0
    %385 = vmatpush1.msra.mxu0 0.0
    %386 = vmatprep.subr.mxu0 0.0
    %387 = vmatpush1.msra.mxu0 0.0
    %388 = vmatprep.subr.mxu0 0.0
    %389 = vmatpush1.msra.mxu0 0.0
    %390 = vmatprep.subr.mxu0 0.0
    %391 = vmatpush1.msra.mxu0 0.0
    %392 = vmatprep.subr.mxu0 0.0
    %393 = vmatpush1.msra.mxu0 0.0
    %394 = vmatprep.subr.mxu0 0.0
    %395 = vmatpush1.msra.mxu0 %v171
    %396 = vmatprep.subr.mxu0 0.0
    %397 = vmatpush1.msra.mxu0 %v165
    %398 = vmatprep.subr.mxu0 0.0
    %399 = vmatpush2.msra.mxu0 0.0
    %400 = vmatprep.subr.mxu0 0.0
    %401 = vmatpush2.msra.mxu0 0.0
    %402 = vmatprep.subr.mxu0 0.0
    %403 = vmatpush2.msra.mxu0 0.0
    %404 = vmatprep.subr.mxu0 0.0
    %405 = vmatpush2.msra.mxu0 0.0
    %406 = vmatprep.subr.mxu0 0.0
    %407 = vmatpush2.msra.mxu0 0.0
    %408 = vmatprep.subr.mxu0 0.0
    %409 = vmatpush2.msra.mxu0 0.0
    %410 = vmatprep.subr.mxu0 0.0
    %411 = vmatpush2.msra.mxu0 0.0
    %412 = vmatprep.subr.mxu0 0.0
    %413 = vmatpush2.msra.mxu0 0.0
    %414 = vmatprep.subr.mxu0 0.0
    %415 = vmatpush2.msra.mxu0 0.0
    %416 = vmatprep.subr.mxu0 0.0
    %417 = vmatpush2.msra.mxu0 0.0
    %418 = vmatprep.subr.mxu0 0.0
    %419 = vmatpush2.msra.mxu0 0.0
    %420 = vmatprep.subr.mxu0 0.0
    %421 = vmatpush2.msra.mxu0 0.0
    %422 = vmatprep.subr.mxu0 0.0
    %423 = vmatpush2.msra.mxu0 0.0
    %424 = vmatprep.subr.mxu0 0.0
    %425 = vmatpush2.msra.mxu0 0.0
    %426 = vmatprep.subr.mxu0 0.0
    %427 = vmatpush2.msra.mxu0 0.0
    %428 = vmatprep.subr.mxu0 0.0
    %429 = vmatpush2.msra.mxu0 0.0
    %430 = vmatprep.mubr.f32.mxu0 0.0
    %431 = vmatmul.mubr.f32.gmra.mxu0 %v361
    %v432 = vpop.f32.mrf.mxu0
    %v433 = vadd.f32 0.0, %v432
    %v434 = vpop.f32.mrf.mxu0
    %435 = vmatprep.mubr.f32.mxu0 0.0
    %436 = vmatmul.mubr.f32.gmra.mxu0 %v364
    %v437 = vpop.f32.mrf.mxu0
    %v438 = vadd.f32 0.0, %v437
    %v439 = vpop.f32.mrf.mxu0
    %440 = vdwg.mxu0
    %441 = vst [vmem:[%s4] sm:$0xff] %v433
    %442 = vst [vmem:[%s4 + $0x8] sm:$0xff] %v438
    // Predicated region
    $region22: #{forward.1} parent=1 // pred_check
      _
    $region23: #{forward.1} parent=1 // pred_check_branch
      %444 = sbr.rel (0) target = $region25
    $region24: #{forward.1} parent=1 // pred_region
      _
    $region25: #{forward.1} parent=1 // pred_fallthru
      _
    // Predicated region
    $region26: #{forward.1} parent=1 // pred_check
      _
    $region27: #{forward.1} parent=1 // pred_check_branch
      %446 = sbr.rel (0) target = $region29
    $region28: #{forward.1} parent=1 // pred_region
      _
    $region29: #{forward.1} parent=1 // pred_fallthru
      _
    %447 = vsyncpa [#allocation3], 1

</llo_original>
